<compile_context>
chip_gen: v6e
topology: v6e:2x2x1
jax: 0.10.0
libtpu: 0.0.40
codegen_flags: <defaults>
</compile_context>

<pallas_src>
import functools
import math

import jax
import jax.numpy as jnp
from jax.experimental import pallas as pl
from jax.experimental.pallas import tpu as pltpu

MINF = -1000000000.0


def _attention_head_kernel(*refs, has_mask, compute_dtype, approx_recip):
    if has_mask:
        (q_ref, k_ref, v_ref, mask_ref,
         wq_ref, bq_ref, wk_ref, bk_ref, wv_ref, bv_ref, o_ref) = refs
    else:
        (q_ref, k_ref, v_ref,
         wq_ref, bq_ref, wk_ref, bk_ref, wv_ref, bv_ref, o_ref) = refs
        mask_ref = None

    Bb, T1, qd = q_ref.shape
    _, T2, kd = k_ref.shape
    vd = v_ref.shape[-1]
    ed = wq_ref.shape[-1]
    cdt = compute_dtype

    # ---- Projections: 2-D MXU matmuls on flattened (Bb*T, dim) rows. -------
    q2 = q_ref[...].reshape(Bb * T1, qd).astype(cdt)
    k2 = k_ref[...].reshape(Bb * T2, kd).astype(cdt)
    v2 = v_ref[...].reshape(Bb * T2, vd).astype(cdt)

    Q = jnp.dot(q2, wq_ref[...].astype(cdt),
                preferred_element_type=jnp.float32) + bq_ref[...]
    K = jnp.dot(k2, wk_ref[...].astype(cdt),
                preferred_element_type=jnp.float32) + bk_ref[...]
    V = jnp.dot(v2, wv_ref[...].astype(cdt),
                preferred_element_type=jnp.float32) + bv_ref[...]

    Q3 = Q.reshape(Bb, T1, ed)
    K3 = K.reshape(Bb, T2, ed)
    V3 = V.reshape(Bb, T2, ed)

    # ---- Scores: batched contraction over the embed dim (no transpose). ----
    scale = 1.0 / math.sqrt(ed)
    E = jnp.einsum("bqe,bke->bqk", Q3.astype(cdt), K3.astype(cdt),
                   preferred_element_type=jnp.float32) * scale  # (Bb,T1,T2)

    if has_mask:
        m = mask_ref[...]                     # (Bb, Tm, T2), Tm in {1, T2}
        # Same soft-mask formula as the PyTorch module (supports fractional masks).
        E = m * E + (1.0 - m) * MINF

    # ---- Numerically-stable softmax over the last axis. ---------------------
    row_max = jnp.max(E, axis=-1, keepdims=True)
    p = jnp.exp(E - row_max)
    denom = jnp.sum(p, axis=-1, keepdims=True)
    A = p * pl.reciprocal(denom, approx=approx_recip)

    # ---- Output = A @ V (batched, MXU). -------------------------------------
    out = jnp.einsum("bqk,bke->bqe", A.astype(cdt), V3.astype(cdt),
                     preferred_element_type=jnp.float32)
    o_ref[...] = out.astype(o_ref.dtype)


def attention_head(q, k, v, params, mask=None, *, batch_block=8,
                   compute_dtype=jnp.bfloat16):
    """q:[B,T1,qd]  k:[B,T2,kd]  v:[B,T2,vd]  mask:[B,1,T2]|[B,T2,T2]|None."""
    wq, bq, wk, bk, wv, bv = params
    B, T1, qd = q.shape
    _, T2, kd = k.shape
    vd = v.shape[-1]
    ed = wq.shape[1]
    has_mask = mask is not None

    # Block several batch elements per grid step (amortizes per-step overhead).
    Bb = max(1, min(B, batch_block))
    nb = pl.cdiv(B, Bb)
    Bpad = nb * Bb
    if Bpad != B:
        pad = ((0, Bpad - B), (0, 0), (0, 0))
        q = jnp.pad(q, pad)
        k = jnp.pad(k, pad)
        v = jnp.pad(v, pad)
        if has_mask:
            mask = jnp.pad(mask, pad, constant_values=1.0)

    # Biases as (1, ed) 2-D tiles for clean VMEM layout / broadcast add.
    bq2 = bq.reshape(1, ed)
    bk2 = bk.reshape(1, ed)
    bv2 = bv.reshape(1, ed)

    kernel = functools.partial(
        _attention_head_kernel,
        has_mask=has_mask,
        compute_dtype=compute_dtype,
        approx_recip=(compute_dtype != jnp.float32),
    )

    in_specs = [
        pl.BlockSpec((Bb, T1, qd), lambda b: (b, 0, 0)),
        pl.BlockSpec((Bb, T2, kd), lambda b: (b, 0, 0)),
        pl.BlockSpec((Bb, T2, vd), lambda b: (b, 0, 0)),
    ]
    inputs = [q, k, v]
    if has_mask:
        Tm = mask.shape[1]
        in_specs.append(pl.BlockSpec((Bb, Tm, T2), lambda b: (b, 0, 0)))
        inputs.append(mask)
    # Weights / biases: constant block indices -> stay VMEM-resident across steps.
    in_specs += [
        pl.BlockSpec((qd, ed), lambda b: (0, 0)),
        pl.BlockSpec((1, ed), lambda b: (0, 0)),
        pl.BlockSpec((kd, ed), lambda b: (0, 0)),
        pl.BlockSpec((1, ed), lambda b: (0, 0)),
        pl.BlockSpec((vd, ed), lambda b: (0, 0)),
        pl.BlockSpec((1, ed), lambda b: (0, 0)),
    ]
    inputs += [wq, bq2, wk, bk2, wv, bv2]

    grid_spec = pltpu.PrefetchScalarGridSpec(
        num_scalar_prefetch=0,
        grid=(nb,),
        in_specs=in_specs,
        out_specs=pl.BlockSpec((Bb, T1, ed), lambda b: (b, 0, 0)),
    )

    out = pl.pallas_call(
        kernel,
        out_shape=jax.ShapeDtypeStruct((Bpad, T1, ed), jnp.float32),
        grid_spec=grid_spec,
        compiler_params=pltpu.CompilerParams(
            dimension_semantics=("parallel",),
            vmem_limit_bytes=32 * 1024 * 1024),
    )(*inputs)

    return out[:B] if Bpad != B else out


def init_params(key, q_dim, k_dim, v_dim, embed_dim):
    """Deterministic init mimicking nn.Linear (uniform +/- 1/sqrt(fan_in)).
    Weights stored pre-transposed as (in_dim, embed_dim)."""
    ks = jax.random.split(key, 6)

    def lin(kw, kb, in_dim):
        bound = 1.0 / math.sqrt(in_dim)
        w = jax.random.uniform(kw, (in_dim, embed_dim), jnp.float32, -bound, bound)
        b = jax.random.uniform(kb, (embed_dim,), jnp.float32, -bound, bound)
        return w, b

    wq, bq = lin(ks[0], ks[1], q_dim)
    wk, bk = lin(ks[2], ks[3], k_dim)
    wv, bv = lin(ks[4], ks[5], v_dim)
    return (wq, bq, wk, bk, wv, bv)


def reference(q, k, v, params, mask=None):
    """Pure-JAX reference replicating the PyTorch forward."""
    wq, bq, wk, bk, wv, bv = params
    Q = q @ wq + bq
    K = k @ wk + bk
    V = v @ wv + bv
    E = jnp.einsum("bte,bse->bts", Q, K) / math.sqrt(wq.shape[1])
    if mask is not None:
        E = mask * E + (1.0 - mask) * MINF
    A = jax.nn.softmax(E, axis=-1)
    return jnp.einsum("bts,bse->bte", A, V)


if __name__ == "__main__":
    key = jax.random.PRNGKey(0)
    B, T1, T2 = 2, 8, 8
    q_dim, k_dim, v_dim, embed_dim = 16, 16, 16, 32

    k_params, k_q, k_k, k_v, k_m = jax.random.split(key, 5)
    params = init_params(k_params, q_dim, k_dim, v_dim, embed_dim)

    q = jax.random.normal(k_q, (B, T1, q_dim), jnp.float32)
    kk = jax.random.normal(k_k, (B, T2, k_dim), jnp.float32)
    vv = jax.random.normal(k_v, (B, T2, v_dim), jnp.float32)
    # Binary mask of shape [B, 1, T2].
    mask = (jax.random.uniform(k_m, (B, 1, T2)) > 0.3).astype(jnp.float32)
    # Full [B, T2, T2] mask variant.
    mask_full = (jax.random.uniform(k_m, (B, T2, T2)) > 0.3).astype(jnp.float32)

    ref_m = reference(q, kk, vv, params, mask)
    ref_f = reference(q, kk, vv, params, mask_full)
    ref_n = reference(q, kk, vv, params, None)

    # Exact path: f32 MXU operands + exact reciprocal -> tight tolerance.
    out_f32 = attention_head(q, kk, vv, params, mask, compute_dtype=jnp.float32)
    jax.block_until_ready(out_f32)
    assert out_f32.shape == (B, T1, embed_dim)
    assert jnp.allclose(out_f32, ref_m, atol=1e-4, rtol=1e-4), "mismatch (f32 path)"

    # Fast path (default): bf16 MXU operands, f32 accumulation, EUP reciprocal.
    out_bf = attention_head(q, kk, vv, params, mask)
    jax.block_until_ready(out_bf)
    assert jnp.allclose(out_bf, ref_m, atol=3e-2, rtol=3e-2), "mismatch (bf16 path)"

    # [B, T2, T2] mask variant.
    out_full = attention_head(q, kk, vv, params, mask_full)
    jax.block_until_ready(out_full)
    assert jnp.allclose(out_full, ref_f, atol=3e-2, rtol=3e-2), "mismatch (full mask)"

    # mask=None: static kernel variant with no mask input / arithmetic.
    out_nm = attention_head(q, kk, vv, params, None)
    jax.block_until_ready(out_nm)
    assert jnp.allclose(out_nm, ref_n, atol=3e-2, rtol=3e-2), "mismatch (no mask)"

    print("KERNEL_OK")
</pallas_src>

<mosaic_0001>
module attributes {stable_mosaic.version = 11 : i64} {
  func.func @_attention_head_kernel(%arg0: i32, %arg1: memref<2x8x16xf32, #tpu.memory_space<vmem>>, %arg2: memref<2x8x16xf32, #tpu.memory_space<vmem>>, %arg3: memref<2x8x16xf32, #tpu.memory_space<vmem>>, %arg4: memref<2x1x8xf32, #tpu.memory_space<vmem>>, %arg5: memref<16x32xf32, #tpu.memory_space<vmem>>, %arg6: memref<1x32xf32, #tpu.memory_space<vmem>>, %arg7: memref<16x32xf32, #tpu.memory_space<vmem>>, %arg8: memref<1x32xf32, #tpu.memory_space<vmem>>, %arg9: memref<16x32xf32, #tpu.memory_space<vmem>>, %arg10: memref<1x32xf32, #tpu.memory_space<vmem>>, %arg11: memref<2x8x32xf32, #tpu.memory_space<vmem>>) attributes {dimension_semantics = [#tpu.dimension_semantics<parallel>], iteration_bounds = array<i64: 1>, scalar_prefetch = 0 : i64, scratch_operands = 0 : i64, tpu.core_type = #tpu.core_type<tc>, window_params = [{transform_indices = @transform_0, window_bounds = array<i64: 2, 8, 16>}, {transform_indices = @transform_1, window_bounds = array<i64: 2, 8, 16>}, {transform_indices = @transform_2, window_bounds = array<i64: 2, 8, 16>}, {transform_indices = @transform_3, window_bounds = array<i64: 2, 1, 8>}, {pipeline_mode = #tpu.pipeline_mode<synchronous>, transform_indices = @transform_4, window_bounds = array<i64: 16, 32>}, {pipeline_mode = #tpu.pipeline_mode<synchronous>, transform_indices = @transform_5, window_bounds = array<i64: 1, 32>}, {pipeline_mode = #tpu.pipeline_mode<synchronous>, transform_indices = @transform_6, window_bounds = array<i64: 16, 32>}, {pipeline_mode = #tpu.pipeline_mode<synchronous>, transform_indices = @transform_7, window_bounds = array<i64: 1, 32>}, {pipeline_mode = #tpu.pipeline_mode<synchronous>, transform_indices = @transform_8, window_bounds = array<i64: 16, 32>}, {pipeline_mode = #tpu.pipeline_mode<synchronous>, transform_indices = @transform_9, window_bounds = array<i64: 1, 32>}, {transform_indices = @transform_10, window_bounds = array<i64: 2, 8, 32>}]} {
    %c0 = arith.constant 0 : index
    %c0_0 = arith.constant 0 : index
    %c0_1 = arith.constant 0 : index
    %0 = vector.load %arg1[%c0, %c0_0, %c0_1] : memref<2x8x16xf32, #tpu.memory_space<vmem>>, vector<2x8x16xf32>
    %1 = vector.shape_cast %0 : vector<2x8x16xf32> to vector<16x16xf32>
    %c0_2 = arith.constant 0 : index
    %c0_3 = arith.constant 0 : index
    %c0_4 = arith.constant 0 : index
    %2 = vector.load %arg2[%c0_2, %c0_3, %c0_4] : memref<2x8x16xf32, #tpu.memory_space<vmem>>, vector<2x8x16xf32>
    %3 = vector.shape_cast %2 : vector<2x8x16xf32> to vector<16x16xf32>
    %c0_5 = arith.constant 0 : index
    %c0_6 = arith.constant 0 : index
    %c0_7 = arith.constant 0 : index
    %4 = vector.load %arg3[%c0_5, %c0_6, %c0_7] : memref<2x8x16xf32, #tpu.memory_space<vmem>>, vector<2x8x16xf32>
    %5 = vector.shape_cast %4 : vector<2x8x16xf32> to vector<16x16xf32>
    %c0_8 = arith.constant 0 : index
    %c0_9 = arith.constant 0 : index
    %6 = vector.load %arg5[%c0_8, %c0_9] : memref<16x32xf32, #tpu.memory_space<vmem>>, vector<16x32xf32>
    %cst = arith.constant dense<0.000000e+00> : vector<16x32xf32>
    %7 = tpu.matmul %1, %6, %cst {dimension_numbers = #tpu.dot_dimension_numbers<[1], [0], [0], [1], [0, 0, 1, 1], [], []>} : vector<16x16xf32>, vector<16x32xf32>, vector<16x32xf32> -> vector<16x32xf32>
    %c0_10 = arith.constant 0 : index
    %c0_11 = arith.constant 0 : index
    %8 = vector.load %arg6[%c0_10, %c0_11] : memref<1x32xf32, #tpu.memory_space<vmem>>, vector<1x32xf32>
    %9 = vector.broadcast %8 : vector<1x32xf32> to vector<16x32xf32>
    %10 = arith.addf %7, %9 : vector<16x32xf32>
    %c0_12 = arith.constant 0 : index
    %c0_13 = arith.constant 0 : index
    %11 = vector.load %arg7[%c0_12, %c0_13] : memref<16x32xf32, #tpu.memory_space<vmem>>, vector<16x32xf32>
    %cst_14 = arith.constant dense<0.000000e+00> : vector<16x32xf32>
    %12 = tpu.matmul %3, %11, %cst_14 {dimension_numbers = #tpu.dot_dimension_numbers<[1], [0], [0], [1], [0, 0, 1, 1], [], []>} : vector<16x16xf32>, vector<16x32xf32>, vector<16x32xf32> -> vector<16x32xf32>
    %c0_15 = arith.constant 0 : index
    %c0_16 = arith.constant 0 : index
    %13 = vector.load %arg8[%c0_15, %c0_16] : memref<1x32xf32, #tpu.memory_space<vmem>>, vector<1x32xf32>
    %14 = vector.broadcast %13 : vector<1x32xf32> to vector<16x32xf32>
    %15 = arith.addf %12, %14 : vector<16x32xf32>
    %c0_17 = arith.constant 0 : index
    %c0_18 = arith.constant 0 : index
    %16 = vector.load %arg9[%c0_17, %c0_18] : memref<16x32xf32, #tpu.memory_space<vmem>>, vector<16x32xf32>
    %cst_19 = arith.constant dense<0.000000e+00> : vector<16x32xf32>
    %17 = tpu.matmul %5, %16, %cst_19 {dimension_numbers = #tpu.dot_dimension_numbers<[1], [0], [0], [1], [0, 0, 1, 1], [], []>} : vector<16x16xf32>, vector<16x32xf32>, vector<16x32xf32> -> vector<16x32xf32>
    %c0_20 = arith.constant 0 : index
    %c0_21 = arith.constant 0 : index
    %18 = vector.load %arg10[%c0_20, %c0_21] : memref<1x32xf32, #tpu.memory_space<vmem>>, vector<1x32xf32>
    %19 = vector.broadcast %18 : vector<1x32xf32> to vector<16x32xf32>
    %20 = arith.addf %17, %19 : vector<16x32xf32>
    %21 = vector.shape_cast %10 : vector<16x32xf32> to vector<2x8x32xf32>
    %22 = vector.shape_cast %15 : vector<16x32xf32> to vector<2x8x32xf32>
    %23 = vector.shape_cast %20 : vector<16x32xf32> to vector<2x8x32xf32>
    "tpu.trace_start"() <{level = 10 : i32, message = "bqe,bke->bqk"}> : () -> ()
    %cst_22 = arith.constant dense<0.000000e+00> : vector<2x8x8xf32>
    %24 = tpu.matmul %21, %22, %cst_22 {dimension_numbers = #tpu.dot_dimension_numbers<[2], [2], [1], [1], [0, 0, 0, 1, 1, 1], [0], [0]>} : vector<2x8x32xf32>, vector<2x8x32xf32>, vector<2x8x8xf32> -> vector<2x8x8xf32>
    "tpu.trace_stop"() : () -> ()
    %cst_23 = arith.constant 0.176776692 : f32
    %25 = vector.broadcast %cst_23 : f32 to vector<2x8x8xf32>
    %26 = arith.mulf %24, %25 : vector<2x8x8xf32>
    %c0_24 = arith.constant 0 : index
    %c0_25 = arith.constant 0 : index
    %c0_26 = arith.constant 0 : index
    %27 = vector.load %arg4[%c0_24, %c0_25, %c0_26] : memref<2x1x8xf32, #tpu.memory_space<vmem>>, vector<2x1x8xf32>
    %28 = vector.broadcast %27 : vector<2x1x8xf32> to vector<2x8x8xf32>
    %29 = arith.mulf %28, %26 : vector<2x8x8xf32>
    %cst_27 = arith.constant 1.000000e+00 : f32
    %30 = vector.broadcast %cst_27 : f32 to vector<2x1x8xf32>
    %31 = arith.subf %30, %27 : vector<2x1x8xf32>
    %cst_28 = arith.constant -1.000000e+09 : f32
    %32 = vector.broadcast %cst_28 : f32 to vector<2x1x8xf32>
    %33 = arith.mulf %31, %32 : vector<2x1x8xf32>
    %34 = vector.broadcast %33 : vector<2x1x8xf32> to vector<2x8x8xf32>
    %35 = arith.addf %29, %34 : vector<2x8x8xf32>
    %cst_29 = arith.constant dense<0xFF800000> : vector<2x8xf32>
    %36 = vector.multi_reduction <maximumf>, %35, %cst_29 [2] : vector<2x8x8xf32> to vector<2x8xf32>
    %37 = vector.shape_cast %36 : vector<2x8xf32> to vector<2x8x1xf32>
    %38 = vector.broadcast %37 : vector<2x8x1xf32> to vector<2x8x8xf32>
    %39 = arith.subf %35, %38 : vector<2x8x8xf32>
    %40 = math.exp %39 : vector<2x8x8xf32>
    %cst_30 = arith.constant dense<0.000000e+00> : vector<2x8xf32>
    %41 = vector.multi_reduction <add>, %40, %cst_30 [2] : vector<2x8x8xf32> to vector<2x8xf32>
    %42 = vector.shape_cast %41 : vector<2x8xf32> to vector<2x8x1xf32>
    %43 = tpu.reciprocal %42 : vector<2x8x1xf32> -> vector<2x8x1xf32>
    %44 = vector.broadcast %43 : vector<2x8x1xf32> to vector<2x8x8xf32>
    %45 = arith.mulf %40, %44 : vector<2x8x8xf32>
    "tpu.trace_start"() <{level = 10 : i32, message = "bqk,bke->bqe"}> : () -> ()
    %cst_31 = arith.constant dense<0.000000e+00> : vector<2x8x32xf32>
    %46 = tpu.matmul %45, %23, %cst_31 {dimension_numbers = #tpu.dot_dimension_numbers<[2], [1], [1], [2], [0, 0, 0, 1, 1, 2], [0], [0]>} : vector<2x8x8xf32>, vector<2x8x32xf32>, vector<2x8x32xf32> -> vector<2x8x32xf32>
    "tpu.trace_stop"() : () -> ()
    %c0_32 = arith.constant 0 : index
    %c0_33 = arith.constant 0 : index
    %c0_34 = arith.constant 0 : index
    %47 = vector.load %arg11[%c0_32, %c0_33, %c0_34] : memref<2x8x32xf32, #tpu.memory_space<vmem>>, vector<2x8x32xf32>
    tpu.vector_store %arg11[%c0_32, %c0_33, %c0_34], %46 {strides = array<i32>} : memref<2x8x32xf32, #tpu.memory_space<vmem>>, vector<2x8x32xf32>,
    return
  }
  func.func @transform_0(%arg0: i32) -> (i32, i32, i32) {
    %c0_i32 = arith.constant 0 : i32
    %c0_i32_0 = arith.constant 0 : i32
    %c0_i32_1 = arith.constant 0 : i32
    return %arg0, %c0_i32, %c0_i32_0 : i32, i32, i32
  }
  func.func @transform_1(%arg0: i32) -> (i32, i32, i32) {
    %c0_i32 = arith.constant 0 : i32
    %c0_i32_0 = arith.constant 0 : i32
    %c0_i32_1 = arith.constant 0 : i32
    return %arg0, %c0_i32, %c0_i32_0 : i32, i32, i32
  }
  func.func @transform_2(%arg0: i32) -> (i32, i32, i32) {
    %c0_i32 = arith.constant 0 : i32
    %c0_i32_0 = arith.constant 0 : i32
    %c0_i32_1 = arith.constant 0 : i32
    return %arg0, %c0_i32, %c0_i32_0 : i32, i32, i32
  }
  func.func @transform_3(%arg0: i32) -> (i32, i32, i32) {
    %c0_i32 = arith.constant 0 : i32
    %c0_i32_0 = arith.constant 0 : i32
    %c0_i32_1 = arith.constant 0 : i32
    return %arg0, %c0_i32, %c0_i32_0 : i32, i32, i32
  }
  func.func @transform_4(%arg0: i32) -> (i32, i32) {
    %c0_i32 = arith.constant 0 : i32
    %c0_i32_0 = arith.constant 0 : i32
    %c0_i32_1 = arith.constant 0 : i32
    return %c0_i32, %c0_i32_0 : i32, i32
  }
  func.func @transform_5(%arg0: i32) -> (i32, i32) {
    %c0_i32 = arith.constant 0 : i32
    %c0_i32_0 = arith.constant 0 : i32
    %c0_i32_1 = arith.constant 0 : i32
    return %c0_i32, %c0_i32_0 : i32, i32
  }
  func.func @transform_6(%arg0: i32) -> (i32, i32) {
    %c0_i32 = arith.constant 0 : i32
    %c0_i32_0 = arith.constant 0 : i32
    %c0_i32_1 = arith.constant 0 : i32
    return %c0_i32, %c0_i32_0 : i32, i32
  }
  func.func @transform_7(%arg0: i32) -> (i32, i32) {
    %c0_i32 = arith.constant 0 : i32
    %c0_i32_0 = arith.constant 0 : i32
    %c0_i32_1 = arith.constant 0 : i32
    return %c0_i32, %c0_i32_0 : i32, i32
  }
  func.func @transform_8(%arg0: i32) -> (i32, i32) {
    %c0_i32 = arith.constant 0 : i32
    %c0_i32_0 = arith.constant 0 : i32
    %c0_i32_1 = arith.constant 0 : i32
    return %c0_i32, %c0_i32_0 : i32, i32
  }
  func.func @transform_9(%arg0: i32) -> (i32, i32) {
    %c0_i32 = arith.constant 0 : i32
    %c0_i32_0 = arith.constant 0 : i32
    %c0_i32_1 = arith.constant 0 : i32
    return %c0_i32, %c0_i32_0 : i32, i32
  }
  func.func @transform_10(%arg0: i32) -> (i32, i32, i32) {
    %c0_i32 = arith.constant 0 : i32
    %c0_i32_0 = arith.constant 0 : i32
    %c0_i32_1 = arith.constant 0 : i32
    return %arg0, %c0_i32, %c0_i32_0 : i32, i32, i32
  }
}

</mosaic_0001>

<llo_original>
// kernel: tpu_custom_call.1
$region0: #{tpu_custom_call.1}
  #allocation0 [shape = 'u32[]', space=smem, size = 0x4, offset = 0x4, fixed_abs, tag = 'smem constant byte address 0x4 - core index']
  #allocation1 [shape = 'u32[144,128]{1,0:T(1,128)}', space=vmem, size = 0x12000, scoped, tag = 'internal scratch']
  %s0 = inlined_call_operand.hbm [shape: f32[2,8,16], index: 0, kind: input, shape index: {}]
  %s1 = inlined_call_operand.hbm [shape: f32[2,8,16], index: 1, kind: input, shape index: {}]
  %s2 = inlined_call_operand.hbm [shape: f32[2,8,16], index: 2, kind: input, shape index: {}]
  %s3 = inlined_call_operand.vmem [shape: f32[2,1,8], index: 3, kind: input, shape index: {}]
  %s4 = inlined_call_operand.hbm [shape: f32[16,32], index: 4, kind: input, shape index: {}]
  %s5 = inlined_call_operand.vmem [shape: f32[1,32], index: 5, kind: input, shape index: {}]
  %s6 = inlined_call_operand.hbm [shape: f32[16,32], index: 6, kind: input, shape index: {}]
  %s7 = inlined_call_operand.vmem [shape: f32[1,32], index: 7, kind: input, shape index: {}]
  %s8 = inlined_call_operand.hbm [shape: f32[16,32], index: 8, kind: input, shape index: {}]
  %s9 = inlined_call_operand.vmem [shape: f32[1,32], index: 9, kind: input, shape index: {}]
  %s10 = inlined_call_operand.hbm [shape: f32[2,8,32], index: 10, kind: output, shape index: {}]
  %s11 = sld [smem:[#allocation0]]
  $region74: #{tpu_custom_call.1} parent=0
    _
  %s13 = ssub.s32 1, %s11
  %s14 = scalar_select 0, %s13, %s11
  $region1: #{tpu_custom_call.1} parent=0
    #allocation2 [shape = 'u8[8192]{0}', space=vmem, size = 0x2000, scoped, tag = 'input window, operand 0, single buffered']
    #allocation3 [shape = 's32[1]{0}', space=sflag, size = 0x4, scoped, tag = 'scoped memory for tpu_custom_call.1']
    #allocation4 [shape = 's32[1]{0}', space=sflag, size = 0x4, scoped, tag = 'scoped memory for tpu_custom_call.1']
    #allocation5 [shape = 'u8[8192]{0}', space=vmem, size = 0x2000, scoped, tag = 'input window, operand 1, single buffered']
    #allocation6 [shape = 's32[1]{0}', space=sflag, size = 0x4, scoped, tag = 'scoped memory for tpu_custom_call.1']
    #allocation7 [shape = 'u8[8192]{0}', space=vmem, size = 0x2000, scoped, tag = 'input window, operand 2, single buffered']
    #allocation8 [shape = 'u8[8192]{0}', space=vmem, size = 0x2000, scoped, tag = 'input window, operand 4, single buffered']
    #allocation9 [shape = 's32[1]{0}', space=sflag, size = 0x4, scoped, tag = 'scoped memory for tpu_custom_call.1']
    #allocation10 [shape = 'u8[8192]{0}', space=vmem, size = 0x2000, scoped, tag = 'input window, operand 6, single buffered']
    #allocation11 [shape = 'u8[8192]{0}', space=vmem, size = 0x2000, scoped, tag = 'input window, operand 8, single buffered']
    #allocation12 [shape = 's32[1]{0}', space=sflag, size = 0x4, scoped, tag = 'scoped memory for tpu_custom_call.1']
    #allocation13 [shape = 'u8[8192]{0}', space=vmem, size = 0x2000, scoped, tag = 'output window, operand 0, single buffered']
    %15 = vsyncpa [#allocation3], 0
    %16 = vsyncpa [#allocation6], 0
    %17 = vsyncpa [#allocation9], 0
    %18 = vsyncpa [#allocation12], 0
    %19 = vsyncpa [#allocation4], 0
    // Predicated region
    $region2: #{tpu_custom_call.1} parent=1 // pred_check
      _
    $region3: #{tpu_custom_call.1} parent=1 // pred_check_branch
      %21 = sbr.rel (0) target = $region5
    $region4: #{tpu_custom_call.1} parent=1 // pred_region
      %s23 = ssub.s32 256, 256
      %24 = vsyncadd [#allocation3], %s23
      %s25 = sshll.u32 [#allocation2], 4
      %s26 = int_to_ptr.vmem [resolvable:$true] %s25
      %31 = dma.hbm_to_vmem [thread:$0]  %s0, 256, %s26, [#allocation3], 128, 128, 8
    $region5: #{tpu_custom_call.1} parent=1 // pred_fallthru
      _
    // Predicated region
    $region6: #{tpu_custom_call.1} parent=1 // pred_check
      _
    $region7: #{tpu_custom_call.1} parent=1 // pred_check_branch
      %33 = sbr.rel (0) target = $region9
    $region8: #{tpu_custom_call.1} parent=1 // pred_region
      %s35 = ssub.s32 256, 256
      %36 = vsyncadd [#allocation6], %s35
      %s37 = sshll.u32 [#allocation5], 4
      %s38 = int_to_ptr.vmem [resolvable:$true] %s37
      %43 = dma.hbm_to_vmem [thread:$0]  %s1, 256, %s38, [#allocation6], 128, 128, 8
    $region9: #{tpu_custom_call.1} parent=1 // pred_fallthru
      _
    // Predicated region
    $region10: #{tpu_custom_call.1} parent=1 // pred_check
      _
    $region11: #{tpu_custom_call.1} parent=1 // pred_check_branch
      %45 = sbr.rel (0) target = $region13
    $region12: #{tpu_custom_call.1} parent=1 // pred_region
      %s47 = ssub.s32 256, 256
      %48 = vsyncadd [#allocation6], %s47
      %s49 = sshll.u32 [#allocation7], 4
      %s50 = int_to_ptr.vmem [resolvable:$true] %s49
      %55 = dma.hbm_to_vmem [thread:$0]  %s2, 256, %s50, [#allocation6], 128, 128, 8
    $region13: #{tpu_custom_call.1} parent=1 // pred_fallthru
      _
    // Predicated region
    $region14: #{tpu_custom_call.1} parent=1 // pred_check
      _
    $region15: #{tpu_custom_call.1} parent=1 // pred_check_branch
      %57 = sbr.rel (0) target = $region17
    $region16: #{tpu_custom_call.1} parent=1 // pred_region
      _
    $region17: #{tpu_custom_call.1} parent=1 // pred_fallthru
      _
    // Predicated region
    $region18: #{tpu_custom_call.1} parent=1 // pred_check
      _
    $region19: #{tpu_custom_call.1} parent=1 // pred_check_branch
      %59 = sbr.rel (0) target = $region21
    $region20: #{tpu_custom_call.1} parent=1 // pred_region
      %s61 = ssub.s32 256, 256
      %62 = vsyncadd [#allocation9], %s61
      %s63 = sshll.u32 [#allocation8], 4
      %s64 = int_to_ptr.vmem [resolvable:$true] %s63
      %69 = dma.hbm_to_vmem [thread:$0]  %s4, 256, %s64, [#allocation9], 128, 128, 8
    $region21: #{tpu_custom_call.1} parent=1 // pred_fallthru
      _
    // Predicated region
    $region22: #{tpu_custom_call.1} parent=1 // pred_check
      _
    $region23: #{tpu_custom_call.1} parent=1 // pred_check_branch
      %71 = sbr.rel (0) target = $region25
    $region24: #{tpu_custom_call.1} parent=1 // pred_region
      _
    $region25: #{tpu_custom_call.1} parent=1 // pred_fallthru
      _
    // Predicated region
    $region26: #{tpu_custom_call.1} parent=1 // pred_check
      _
    $region27: #{tpu_custom_call.1} parent=1 // pred_check_branch
      %73 = sbr.rel (0) target = $region29
    $region28: #{tpu_custom_call.1} parent=1 // pred_region
      %s75 = ssub.s32 256, 256
      %76 = vsyncadd [#allocation9], %s75
      %s77 = sshll.u32 [#allocation10], 4
      %s78 = int_to_ptr.vmem [resolvable:$true] %s77
      %83 = dma.hbm_to_vmem [thread:$0]  %s6, 256, %s78, [#allocation9], 128, 128, 8
    $region29: #{tpu_custom_call.1} parent=1 // pred_fallthru
      _
    // Predicated region
    $region30: #{tpu_custom_call.1} parent=1 // pred_check
      _
    $region31: #{tpu_custom_call.1} parent=1 // pred_check_branch
      %85 = sbr.rel (0) target = $region33
    $region32: #{tpu_custom_call.1} parent=1 // pred_region
      _
    $region33: #{tpu_custom_call.1} parent=1 // pred_fallthru
      _
    // Predicated region
    $region34: #{tpu_custom_call.1} parent=1 // pred_check
      _
    $region35: #{tpu_custom_call.1} parent=1 // pred_check_branch
      %87 = sbr.rel (0) target = $region37
    $region36: #{tpu_custom_call.1} parent=1 // pred_region
      %s89 = ssub.s32 256, 256
      %90 = vsyncadd [#allocation12], %s89
      %s91 = sshll.u32 [#allocation11], 4
      %s92 = int_to_ptr.vmem [resolvable:$true] %s91
      %97 = dma.hbm_to_vmem [thread:$0]  %s8, 256, %s92, [#allocation12], 128, 128, 8
    $region37: #{tpu_custom_call.1} parent=1 // pred_fallthru
      _
    // Predicated region
    $region38: #{tpu_custom_call.1} parent=1 // pred_check
      _
    $region39: #{tpu_custom_call.1} parent=1 // pred_check_branch
      %99 = sbr.rel (0) target = $region41
    $region40: #{tpu_custom_call.1} parent=1 // pred_region
      _
    $region41: #{tpu_custom_call.1} parent=1 // pred_fallthru
      _
    // Predicated region
    $region42: #{tpu_custom_call.1} parent=1 // pred_check
      _
    $region43: #{tpu_custom_call.1} parent=1 // pred_check_branch
      %101 = sbr.rel (0) target = $region45
    $region44: #{tpu_custom_call.1} parent=1 // pred_region
      %102 = dma.done [#allocation3], 256
    $region45: #{tpu_custom_call.1} parent=1 // pred_fallthru
      _
    // Predicated region
    $region46: #{tpu_custom_call.1} parent=1 // pred_check
      _
    $region47: #{tpu_custom_call.1} parent=1 // pred_check_branch
      %104 = sbr.rel (0) target = $region49
    $region48: #{tpu_custom_call.1} parent=1 // pred_region
      %105 = dma.done [#allocation6], 256
    $region49: #{tpu_custom_call.1} parent=1 // pred_fallthru
      _
    // Predicated region
    $region50: #{tpu_custom_call.1} parent=1 // pred_check
      _
    $region51: #{tpu_custom_call.1} parent=1 // pred_check_branch
      %107 = sbr.rel (0) target = $region53
    $region52: #{tpu_custom_call.1} parent=1 // pred_region
      %108 = dma.done [#allocation6], 256
    $region53: #{tpu_custom_call.1} parent=1 // pred_fallthru
      _
    // Predicated region
    $region54: #{tpu_custom_call.1} parent=1 // pred_check
      _
    $region55: #{tpu_custom_call.1} parent=1 // pred_check_branch
      %110 = sbr.rel (0) target = $region57
    $region56: #{tpu_custom_call.1} parent=1 // pred_region
      %111 = dma.done [#allocation9], 256
    $region57: #{tpu_custom_call.1} parent=1 // pred_fallthru
      _
    // Predicated region
    $region58: #{tpu_custom_call.1} parent=1 // pred_check
      _
    $region59: #{tpu_custom_call.1} parent=1 // pred_check_branch
      %113 = sbr.rel (0) target = $region61
    $region60: #{tpu_custom_call.1} parent=1 // pred_region
      %114 = dma.done [#allocation9], 256
    $region61: #{tpu_custom_call.1} parent=1 // pred_fallthru
      _
    // Predicated region
    $region62: #{tpu_custom_call.1} parent=1 // pred_check
      _
    $region63: #{tpu_custom_call.1} parent=1 // pred_check_branch
      %116 = sbr.rel (0) target = $region65
    $region64: #{tpu_custom_call.1} parent=1 // pred_region
      %117 = dma.done [#allocation12], 256
    $region65: #{tpu_custom_call.1} parent=1 // pred_fallthru
      _
    %v118 = vld [vmem:[#allocation2] sm:$0xff]
    %v119 = vld [vmem:[#allocation2 + $0x8] sm:$0xff]
    %v120 = vld [vmem:[#allocation5] sm:$0xff]
    %v121 = vld [vmem:[#allocation5 + $0x8] sm:$0xff]
    %v122 = vld [vmem:[#allocation7] sm:$0xff]
    %v123 = vld [vmem:[#allocation7 + $0x8] sm:$0xff]
    %v124 = vld [vmem:[#allocation8] sm:$0xff]
    %v125 = vld [vmem:[#allocation8 + $0x8] sm:$0xff]
    %v126 = vld [vmem:[%s5] sm:$0x1]
    %v128 = vlaneseq
    %v129 = vshrl.u32 %v128, 7
    %v130 = vsub.s32 0, %v129
    %v131 = vrot.slane %v126, %v130
    %vm133 = vcmask 130048
    %v135 = vsel %vm133, %v118, 0
    %v138 = vsel %vm133, %v119, 0
    %140 = vmatprep.subr.mxu0 0.0
    %141 = vmatpush1.msra.mxu0 0.0
    %142 = vmatprep.subr.mxu0 0.0
    %143 = vmatpush1.msra.mxu0 0.0
    %144 = vmatprep.subr.mxu0 0.0
    %145 = vmatpush1.msra.mxu0 0.0
    %146 = vmatprep.subr.mxu0 0.0
    %147 = vmatpush1.msra.mxu0 0.0
    %148 = vmatprep.subr.mxu0 0.0
    %149 = vmatpush1.msra.mxu0 0.0
    %150 = vmatprep.subr.mxu0 0.0
    %151 = vmatpush1.msra.mxu0 0.0
    %152 = vmatprep.subr.mxu0 0.0
    %153 = vmatpush1.msra.mxu0 0.0
    %154 = vmatprep.subr.mxu0 0.0
    %155 = vmatpush1.msra.mxu0 0.0
    %156 = vmatprep.subr.mxu0 0.0
    %157 = vmatpush1.msra.mxu0 0.0
    %158 = vmatprep.subr.mxu0 0.0
    %159 = vmatpush1.msra.mxu0 0.0
    %160 = vmatprep.subr.mxu0 0.0
    %161 = vmatpush1.msra.mxu0 0.0
    %162 = vmatprep.subr.mxu0 0.0
    %163 = vmatpush1.msra.mxu0 0.0
    %164 = vmatprep.subr.mxu0 0.0
    %165 = vmatpush1.msra.mxu0 0.0
    %166 = vmatprep.subr.mxu0 0.0
    %167 = vmatpush1.msra.mxu0 0.0
    %168 = vmatprep.subr.mxu0 0.0
    %169 = vmatpush1.msra.mxu0 %v125
    %170 = vmatprep.subr.mxu0 0.0
    %171 = vmatpush1.msra.mxu0 %v124
    %172 = vmatprep.subr.mxu0 0.0
    %173 = vmatpush2.msra.mxu0 0.0
    %174 = vmatprep.subr.mxu0 0.0
    %175 = vmatpush2.msra.mxu0 0.0
    %176 = vmatprep.subr.mxu0 0.0
    %177 = vmatpush2.msra.mxu0 0.0
    %178 = vmatprep.subr.mxu0 0.0
    %179 = vmatpush2.msra.mxu0 0.0
    %180 = vmatprep.subr.mxu0 0.0
    %181 = vmatpush2.msra.mxu0 0.0
    %182 = vmatprep.subr.mxu0 0.0
    %183 = vmatpush2.msra.mxu0 0.0
    %184 = vmatprep.subr.mxu0 0.0
    %185 = vmatpush2.msra.mxu0 0.0
    %186 = vmatprep.subr.mxu0 0.0
    %187 = vmatpush2.msra.mxu0 0.0
    %188 = vmatprep.subr.mxu0 0.0
    %189 = vmatpush2.msra.mxu0 0.0
    %190 = vmatprep.subr.mxu0 0.0
    %191 = vmatpush2.msra.mxu0 0.0
    %192 = vmatprep.subr.mxu0 0.0
    %193 = vmatpush2.msra.mxu0 0.0
    %194 = vmatprep.subr.mxu0 0.0
    %195 = vmatpush2.msra.mxu0 0.0
    %196 = vmatprep.subr.mxu0 0.0
    %197 = vmatpush2.msra.mxu0 0.0
    %198 = vmatprep.subr.mxu0 0.0
    %199 = vmatpush2.msra.mxu0 0.0
    %200 = vmatprep.subr.mxu0 0.0
    %201 = vmatpush2.msra.mxu0 0.0
    %202 = vmatprep.subr.mxu0 0.0
    %203 = vmatpush2.msra.mxu0 0.0
    %204 = vmatprep.mubr.f32.mxu0 0.0
    %205 = vmatmul.mubr.f32.gmra.mxu0 %v135
    %v206 = vpop.f32.mrf.mxu0
    %v207 = vadd.f32 %v131, %v206
    %v208 = vpop.f32.mrf.mxu0
    %209 = vmatprep.mubr.f32.mxu0 0.0
    %210 = vmatmul.mubr.f32.gmra.mxu0 %v138
    %v211 = vpop.f32.mrf.mxu0
    %v212 = vadd.f32 %v131, %v211
    %v213 = vpop.f32.mrf.mxu0
    %214 = vdwg.mxu0
    %v215 = vld [vmem:[#allocation10] sm:$0xff]
    %v216 = vld [vmem:[#allocation10 + $0x8] sm:$0xff]
    %v217 = vld [vmem:[%s7] sm:$0x1]
    %v219 = vlaneseq
    %v220 = vshrl.u32 %v219, 7
    %v221 = vsub.s32 0, %v220
    %v222 = vrot.slane %v217, %v221
    %v225 = vsel %vm133, %v120, 0
    %v228 = vsel %vm133, %v121, 0
    %230 = vmatprep.subr.mxu0 0.0
    %231 = vmatpush1.msra.mxu0 0.0
    %232 = vmatprep.subr.mxu0 0.0
    %233 = vmatpush1.msra.mxu0 0.0
    %234 = vmatprep.subr.mxu0 0.0
    %235 = vmatpush1.msra.mxu0 0.0
    %236 = vmatprep.subr.mxu0 0.0
    %237 = vmatpush1.msra.mxu0 0.0
    %238 = vmatprep.subr.mxu0 0.0
    %239 = vmatpush1.msra.mxu0 0.0
    %240 = vmatprep.subr.mxu0 0.0
    %241 = vmatpush1.msra.mxu0 0.0
    %242 = vmatprep.subr.mxu0 0.0
    %243 = vmatpush1.msra.mxu0 0.0
    %244 = vmatprep.subr.mxu0 0.0
    %245 = vmatpush1.msra.mxu0 0.0
    %246 = vmatprep.subr.mxu0 0.0
    %247 = vmatpush1.msra.mxu0 0.0
    %248 = vmatprep.subr.mxu0 0.0
    %249 = vmatpush1.msra.mxu0 0.0
    %250 = vmatprep.subr.mxu0 0.0
    %251 = vmatpush1.msra.mxu0 0.0
    %252 = vmatprep.subr.mxu0 0.0
    %253 = vmatpush1.msra.mxu0 0.0
    %254 = vmatprep.subr.mxu0 0.0
    %255 = vmatpush1.msra.mxu0 0.0
    %256 = vmatprep.subr.mxu0 0.0
    %257 = vmatpush1.msra.mxu0 0.0
    %258 = vmatprep.subr.mxu0 0.0
    %259 = vmatpush1.msra.mxu0 %v216
    %260 = vmatprep.subr.mxu0 0.0
    %261 = vmatpush1.msra.mxu0 %v215
    %262 = vmatprep.subr.mxu0 0.0
    %263 = vmatpush2.msra.mxu0 0.0
    %264 = vmatprep.subr.mxu0 0.0
    %265 = vmatpush2.msra.mxu0 0.0
    %266 = vmatprep.subr.mxu0 0.0
    %267 = vmatpush2.msra.mxu0 0.0
    %268 = vmatprep.subr.mxu0 0.0
    %269 = vmatpush2.msra.mxu0 0.0
    %270 = vmatprep.subr.mxu0 0.0
    %271 = vmatpush2.msra.mxu0 0.0
    %272 = vmatprep.subr.mxu0 0.0
    %273 = vmatpush2.msra.mxu0 0.0
    %274 = vmatprep.subr.mxu0 0.0
    %275 = vmatpush2.msra.mxu0 0.0
    %276 = vmatprep.subr.mxu0 0.0
    %277 = vmatpush2.msra.mxu0 0.0
    %278 = vmatprep.subr.mxu0 0.0
    %279 = vmatpush2.msra.mxu0 0.0
    %280 = vmatprep.subr.mxu0 0.0
    %281 = vmatpush2.msra.mxu0 0.0
    %282 = vmatprep.subr.mxu0 0.0
    %283 = vmatpush2.msra.mxu0 0.0
    %284 = vmatprep.subr.mxu0 0.0
    %285 = vmatpush2.msra.mxu0 0.0
    %286 = vmatprep.subr.mxu0 0.0
    %287 = vmatpush2.msra.mxu0 0.0
    %288 = vmatprep.subr.mxu0 0.0
    %289 = vmatpush2.msra.mxu0 0.0
    %290 = vmatprep.subr.mxu0 0.0
    %291 = vmatpush2.msra.mxu0 0.0
    %292 = vmatprep.subr.mxu0 0.0
    %293 = vmatpush2.msra.mxu0 0.0
    %294 = vmatprep.mubr.f32.mxu0 0.0
    %295 = vmatmul.mubr.f32.gmra.mxu0 %v225
    %v296 = vpop.f32.mrf.mxu0
    %v297 = vadd.f32 %v222, %v296
    %v298 = vpop.f32.mrf.mxu0
    %299 = vmatprep.mubr.f32.mxu0 0.0
    %300 = vmatmul.mubr.f32.gmra.mxu0 %v228
    %v301 = vpop.f32.mrf.mxu0
    %v302 = vadd.f32 %v222, %v301
    %v303 = vpop.f32.mrf.mxu0
    %304 = vdwg.mxu0
    %v305 = vld [vmem:[#allocation11] sm:$0xff]
    %v306 = vld [vmem:[#allocation11 + $0x8] sm:$0xff]
    %v307 = vld [vmem:[%s9] sm:$0x1]
    %v309 = vlaneseq
    %v310 = vshrl.u32 %v309, 7
    %v311 = vsub.s32 0, %v310
    %v312 = vrot.slane %v307, %v311
    %v315 = vsel %vm133, %v122, 0
    %v318 = vsel %vm133, %v123, 0
    %320 = vmatprep.subr.mxu0 0.0
    %321 = vmatpush1.msra.mxu0 0.0
    %322 = vmatprep.subr.mxu0 0.0
    %323 = vmatpush1.msra.mxu0 0.0
    %324 = vmatprep.subr.mxu0 0.0
    %325 = vmatpush1.msra.mxu0 0.0
    %326 = vmatprep.subr.mxu0 0.0
    %327 = vmatpush1.msra.mxu0 0.0
    %328 = vmatprep.subr.mxu0 0.0
    %329 = vmatpush1.msra.mxu0 0.0
    %330 = vmatprep.subr.mxu0 0.0
    %331 = vmatpush1.msra.mxu0 0.0
    %332 = vmatprep.subr.mxu0 0.0
    %333 = vmatpush1.msra.mxu0 0.0
    %334 = vmatprep.subr.mxu0 0.0
    %335 = vmatpush1.msra.mxu0 0.0
    %336 = vmatprep.subr.mxu0 0.0
    %337 = vmatpush1.msra.mxu0 0.0
    %338 = vmatprep.subr.mxu0 0.0
    %339 = vmatpush1.msra.mxu0 0.0
    %340 = vmatprep.subr.mxu0 0.0
    %341 = vmatpush1.msra.mxu0 0.0
    %342 = vmatprep.subr.mxu0 0.0
    %343 = vmatpush1.msra.mxu0 0.0
    %344 = vmatprep.subr.mxu0 0.0
    %345 = vmatpush1.msra.mxu0 0.0
    %346 = vmatprep.subr.mxu0 0.0
    %347 = vmatpush1.msra.mxu0 0.0
    %348 = vmatprep.subr.mxu0 0.0
    %349 = vmatpush1.msra.mxu0 %v306
    %350 = vmatprep.subr.mxu0 0.0
    %351 = vmatpush1.msra.mxu0 %v305
    %352 = vmatprep.subr.mxu0 0.0
    %353 = vmatpush2.msra.mxu0 0.0
    %354 = vmatprep.subr.mxu0 0.0
    %355 = vmatpush2.msra.mxu0 0.0
    %356 = vmatprep.subr.mxu0 0.0
    %357 = vmatpush2.msra.mxu0 0.0
    %358 = vmatprep.subr.mxu0 0.0
    %359 = vmatpush2.msra.mxu0 0.0
    %360 = vmatprep.subr.mxu0 0.0
    %361 = vmatpush2.msra.mxu0 0.0
    %362 = vmatprep.subr.mxu0 0.0
    %363 = vmatpush2.msra.mxu0 0.0
    %364 = vmatprep.subr.mxu0 0.0
    %365 = vmatpush2.msra.mxu0 0.0
    %366 = vmatprep.subr.mxu0 0.0
    %367 = vmatpush2.msra.mxu0 0.0
    %368 = vmatprep.subr.mxu0 0.0
    %369 = vmatpush2.msra.mxu0 0.0
    %370 = vmatprep.subr.mxu0 0.0
    %371 = vmatpush2.msra.mxu0 0.0
    %372 = vmatprep.subr.mxu0 0.0
    %373 = vmatpush2.msra.mxu0 0.0
    %374 = vmatprep.subr.mxu0 0.0
    %375 = vmatpush2.msra.mxu0 0.0
    %376 = vmatprep.subr.mxu0 0.0
    %377 = vmatpush2.msra.mxu0 0.0
    %378 = vmatprep.subr.mxu0 0.0
    %379 = vmatpush2.msra.mxu0 0.0
    %380 = vmatprep.subr.mxu0 0.0
    %381 = vmatpush2.msra.mxu0 0.0
    %382 = vmatprep.subr.mxu0 0.0
    %383 = vmatpush2.msra.mxu0 0.0
    %384 = vmatprep.mubr.f32.mxu0 0.0
    %385 = vmatmul.mubr.f32.gmra.mxu0 %v315
    %v386 = vpop.f32.mrf.mxu0
    %v387 = vadd.f32 %v312, %v386
    %v388 = vpop.f32.mrf.mxu0
    %389 = vmatprep.mubr.f32.mxu0 0.0
    %390 = vmatmul.mubr.f32.gmra.mxu0 %v318
    %v391 = vpop.f32.mrf.mxu0
    %v392 = vadd.f32 %v312, %v391
    %v393 = vpop.f32.mrf.mxu0
    %394 = vdwg.mxu0
    %vm395 = vcmask 261120
    %v397 = vsel %vm395, %v207, 0
    %v400 = vsel %vm395, %v297, 0
    %402 = vmatprep.subr.mxu0 0.0
    %403 = vmatpush1.xpose.msra.mxu0 0.0
    %404 = vmatprep.subr.mxu0 0.0
    %405 = vmatpush1.xpose.msra.mxu0 0.0
    %406 = vmatprep.subr.mxu0 0.0
    %407 = vmatpush1.xpose.msra.mxu0 0.0
    %408 = vmatprep.subr.mxu0 0.0
    %409 = vmatpush1.xpose.msra.mxu0 0.0
    %410 = vmatprep.subr.mxu0 0.0
    %411 = vmatpush1.xpose.msra.mxu0 0.0
    %412 = vmatprep.subr.mxu0 0.0
    %413 = vmatpush1.xpose.msra.mxu0 0.0
    %414 = vmatprep.subr.mxu0 0.0
    %415 = vmatpush1.xpose.msra.mxu0 0.0
    %416 = vmatprep.subr.mxu0 0.0
    %417 = vmatpush1.xpose.msra.mxu0 0.0
    %418 = vmatprep.subr.mxu0 0.0
    %419 = vmatpush1.xpose.msra.mxu0 0.0
    %420 = vmatprep.subr.mxu0 0.0
    %421 = vmatpush1.xpose.msra.mxu0 0.0
    %422 = vmatprep.subr.mxu0 0.0
    %423 = vmatpush1.xpose.msra.mxu0 0.0
    %424 = vmatprep.subr.mxu0 0.0
    %425 = vmatpush1.xpose.msra.mxu0 0.0
    %426 = vmatprep.subr.mxu0 0.0
    %427 = vmatpush1.xpose.msra.mxu0 0.0
    %428 = vmatprep.subr.mxu0 0.0
    %429 = vmatpush1.xpose.msra.mxu0 0.0
    %430 = vmatprep.subr.mxu0 0.0
    %431 = vmatpush1.xpose.msra.mxu0 0.0
    %432 = vmatprep.subr.mxu0 0.0
    %433 = vmatpush1.xpose.msra.mxu0 %v400
    %434 = vmatprep.subr.mxu0 0.0
    %435 = vmatpush2.xpose.msra.mxu0 0.0
    %436 = vmatprep.subr.mxu0 0.0
    %437 = vmatpush2.xpose.msra.mxu0 0.0
    %438 = vmatprep.subr.mxu0 0.0
    %439 = vmatpush2.xpose.msra.mxu0 0.0
    %440 = vmatprep.subr.mxu0 0.0
    %441 = vmatpush2.xpose.msra.mxu0 0.0
    %442 = vmatprep.subr.mxu0 0.0
    %443 = vmatpush2.xpose.msra.mxu0 0.0
    %444 = vmatprep.subr.mxu0 0.0
    %445 = vmatpush2.xpose.msra.mxu0 0.0
    %446 = vmatprep.subr.mxu0 0.0
    %447 = vmatpush2.xpose.msra.mxu0 0.0
    %448 = vmatprep.subr.mxu0 0.0
    %449 = vmatpush2.xpose.msra.mxu0 0.0
    %450 = vmatprep.subr.mxu0 0.0
    %451 = vmatpush2.xpose.msra.mxu0 0.0
    %452 = vmatprep.subr.mxu0 0.0
    %453 = vmatpush2.xpose.msra.mxu0 0.0
    %454 = vmatprep.subr.mxu0 0.0
    %455 = vmatpush2.xpose.msra.mxu0 0.0
    %456 = vmatprep.subr.mxu0 0.0
    %457 = vmatpush2.xpose.msra.mxu0 0.0
    %458 = vmatprep.subr.mxu0 0.0
    %459 = vmatpush2.xpose.msra.mxu0 0.0
    %460 = vmatprep.subr.mxu0 0.0
    %461 = vmatpush2.xpose.msra.mxu0 0.0
    %462 = vmatprep.subr.mxu0 0.0
    %463 = vmatpush2.xpose.msra.mxu0 0.0
    %464 = vmatprep.subr.mxu0 0.0
    %465 = vmatpush2.xpose.msra.mxu0 0.0
    %466 = vmatprep.mubr.f32.mxu0 0.0
    %467 = vmatmul.mubr.f32.gmra.mxu0 %v397
    %v468 = vpop.f32.mrf.mxu0
    %v469 = vadd.f32 0.0, %v468
    %v470 = vpop.f32.mrf.mxu0
    %471 = vdwg.mxu0
    %v473 = vsel %vm395, %v212, 0
    %v476 = vsel %vm395, %v302, 0
    %478 = vmatprep.subr.mxu0 0.0
    %479 = vmatpush1.xpose.msra.mxu0 0.0
    %480 = vmatprep.subr.mxu0 0.0
    %481 = vmatpush1.xpose.msra.mxu0 0.0
    %482 = vmatprep.subr.mxu0 0.0
    %483 = vmatpush1.xpose.msra.mxu0 0.0
    %484 = vmatprep.subr.mxu0 0.0
    %485 = vmatpush1.xpose.msra.mxu0 0.0
    %486 = vmatprep.subr.mxu0 0.0
    %487 = vmatpush1.xpose.msra.mxu0 0.0
    %488 = vmatprep.subr.mxu0 0.0
    %489 = vmatpush1.xpose.msra.mxu0 0.0
    %490 = vmatprep.subr.mxu0 0.0
    %491 = vmatpush1.xpose.msra.mxu0 0.0
    %492 = vmatprep.subr.mxu0 0.0
    %493 = vmatpush1.xpose.msra.mxu0 0.0
    %494 = vmatprep.subr.mxu0 0.0
    %495 = vmatpush1.xpose.msra.mxu0 0.0
    %496 = vmatprep.subr.mxu0 0.0
    %497 = vmatpush1.xpose.msra.mxu0 0.0
    %498 = vmatprep.subr.mxu0 0.0
    %499 = vmatpush1.xpose.msra.mxu0 0.0
    %500 = vmatprep.subr.mxu0 0.0
    %501 = vmatpush1.xpose.msra.mxu0 0.0
    %502 = vmatprep.subr.mxu0 0.0
    %503 = vmatpush1.xpose.msra.mxu0 0.0
    %504 = vmatprep.subr.mxu0 0.0
    %505 = vmatpush1.xpose.msra.mxu0 0.0
    %506 = vmatprep.subr.mxu0 0.0
    %507 = vmatpush1.xpose.msra.mxu0 0.0
    %508 = vmatprep.subr.mxu0 0.0
    %509 = vmatpush1.xpose.msra.mxu0 %v476
    %510 = vmatprep.subr.mxu0 0.0
    %511 = vmatpush2.xpose.msra.mxu0 0.0
    %512 = vmatprep.subr.mxu0 0.0
    %513 = vmatpush2.xpose.msra.mxu0 0.0
    %514 = vmatprep.subr.mxu0 0.0
    %515 = vmatpush2.xpose.msra.mxu0 0.0
    %516 = vmatprep.subr.mxu0 0.0
    %517 = vmatpush2.xpose.msra.mxu0 0.0
    %518 = vmatprep.subr.mxu0 0.0
    %519 = vmatpush2.xpose.msra.mxu0 0.0
    %520 = vmatprep.subr.mxu0 0.0
    %521 = vmatpush2.xpose.msra.mxu0 0.0
    %522 = vmatprep.subr.mxu0 0.0
    %523 = vmatpush2.xpose.msra.mxu0 0.0
    %524 = vmatprep.subr.mxu0 0.0
    %525 = vmatpush2.xpose.msra.mxu0 0.0
    %526 = vmatprep.subr.mxu0 0.0
    %527 = vmatpush2.xpose.msra.mxu0 0.0
    %528 = vmatprep.subr.mxu0 0.0
    %529 = vmatpush2.xpose.msra.mxu0 0.0
    %530 = vmatprep.subr.mxu0 0.0
    %531 = vmatpush2.xpose.msra.mxu0 0.0
    %532 = vmatprep.subr.mxu0 0.0
    %533 = vmatpush2.xpose.msra.mxu0 0.0
    %534 = vmatprep.subr.mxu0 0.0
    %535 = vmatpush2.xpose.msra.mxu0 0.0
    %536 = vmatprep.subr.mxu0 0.0
    %537 = vmatpush2.xpose.msra.mxu0 0.0
    %538 = vmatprep.subr.mxu0 0.0
    %539 = vmatpush2.xpose.msra.mxu0 0.0
    %540 = vmatprep.subr.mxu0 0.0
    %541 = vmatpush2.xpose.msra.mxu0 0.0
    %542 = vmatprep.mubr.f32.mxu0 0.0
    %543 = vmatmul.mubr.f32.gmra.mxu0 %v473
    %v544 = vpop.f32.mrf.mxu0
    %v545 = vadd.f32 0.0, %v544
    %v546 = vpop.f32.mrf.mxu0
    %547 = vdwg.mxu0
    %v548 = vmul.f32 %v469, 0.17677669
    %v549 = vmul.f32 %v545, 0.17677669
    %v550 = vld [vmem:[%s3] sm:$0x1]
    %v551 = vld [vmem:[%s3 + $0x1] sm:$0x1]
    %v554 = vlaneseq
    %v555 = vshrl.u32 %v554, 7
    %v556 = vsub.s32 0, %v555
    %v557 = vrot.slane %v550, %v556
    %v558 = vlaneseq
    %v559 = vshrl.u32 %v558, 7
    %v560 = vsub.s32 0, %v559
    %v561 = vrot.slane %v551, %v560
    %v564 = vmul.f32 %v557, %v548
    %v565 = vmul.f32 %v561, %v549
    %v566 = vsub.f32 1.0, %v550
    %v567 = vsub.f32 1.0, %v551
    %v568 = vmul.f32 %v566, -1e+09
    %v569 = vmul.f32 %v567, -1e+09
    %v572 = vlaneseq
    %v573 = vshrl.u32 %v572, 7
    %v574 = vsub.s32 0, %v573
    %v575 = vrot.slane %v568, %v574
    %v576 = vlaneseq
    %v577 = vshrl.u32 %v576, 7
    %v578 = vsub.s32 0, %v577
    %v579 = vrot.slane %v569, %v578
    %v582 = vadd.f32 %v564, %v575
    %v583 = vadd.f32 %v565, %v579
    %vm584 = vcmask 64512
    %v585 = vsel %vm584, %v582, -inf
    %586 = vmax.xlane.f32.xlu0 %v585
    %v587 = vpop.xlane.xlu0 %586
    %v588 = vsel %vm584, %v583, -inf
    %589 = vmax.xlane.f32.xlu0 %v588
    %v590 = vpop.xlane.xlu0 %589
    %v591 = vsub.f32 %v582, %v587
    %v592 = vsub.f32 %v583, %v590
    %v593 = vmul.f32 %v591, 1.442695
    %v594 = vpow.pop %v593
    %v595 = vmul.f32 %v592, 1.442695
    %v596 = vpow.pop %v595
    %v597 = vsel %vm584, %v594, 0.0
    %598 = vadd.xlane.f32.xlu0 %v597
    %v599 = vpop.xlane.xlu0 %598
    %v600 = vsel %vm584, %v596, 0.0
    %601 = vadd.xlane.f32.xlu0 %v600
    %v602 = vpop.xlane.xlu0 %601
    %v603 = vrcp.pop %v599
    %v604 = vrcp.pop %v602
    %v605 = vmul.f32 %v594, %v603
    %v606 = vmul.f32 %v596, %v604
    %v608 = vsel %vm584, %v605, 0
    %610 = vmatprep.subr.mxu0 0.0
    %611 = vmatpush1.msra.mxu0 0.0
    %612 = vmatprep.subr.mxu0 0.0
    %613 = vmatpush1.msra.mxu0 0.0
    %614 = vmatprep.subr.mxu0 0.0
    %615 = vmatpush1.msra.mxu0 0.0
    %616 = vmatprep.subr.mxu0 0.0
    %617 = vmatpush1.msra.mxu0 0.0
    %618 = vmatprep.subr.mxu0 0.0
    %619 = vmatpush1.msra.mxu0 0.0
    %620 = vmatprep.subr.mxu0 0.0
    %621 = vmatpush1.msra.mxu0 0.0
    %622 = vmatprep.subr.mxu0 0.0
    %623 = vmatpush1.msra.mxu0 0.0
    %624 = vmatprep.subr.mxu0 0.0
    %625 = vmatpush1.msra.mxu0 0.0
    %626 = vmatprep.subr.mxu0 0.0
    %627 = vmatpush1.msra.mxu0 0.0
    %628 = vmatprep.subr.mxu0 0.0
    %629 = vmatpush1.msra.mxu0 0.0
    %630 = vmatprep.subr.mxu0 0.0
    %631 = vmatpush1.msra.mxu0 0.0
    %632 = vmatprep.subr.mxu0 0.0
    %633 = vmatpush1.msra.mxu0 0.0
    %634 = vmatprep.subr.mxu0 0.0
    %635 = vmatpush1.msra.mxu0 0.0
    %636 = vmatprep.subr.mxu0 0.0
    %637 = vmatpush1.msra.mxu0 0.0
    %638 = vmatprep.subr.mxu0 0.0
    %639 = vmatpush1.msra.mxu0 0.0
    %640 = vmatprep.subr.mxu0 0.0
    %641 = vmatpush1.msra.mxu0 %v387
    %642 = vmatprep.subr.mxu0 0.0
    %643 = vmatpush2.msra.mxu0 0.0
    %644 = vmatprep.subr.mxu0 0.0
    %645 = vmatpush2.msra.mxu0 0.0
    %646 = vmatprep.subr.mxu0 0.0
    %647 = vmatpush2.msra.mxu0 0.0
    %648 = vmatprep.subr.mxu0 0.0
    %649 = vmatpush2.msra.mxu0 0.0
    %650 = vmatprep.subr.mxu0 0.0
    %651 = vmatpush2.msra.mxu0 0.0
    %652 = vmatprep.subr.mxu0 0.0
    %653 = vmatpush2.msra.mxu0 0.0
    %654 = vmatprep.subr.mxu0 0.0
    %655 = vmatpush2.msra.mxu0 0.0
    %656 = vmatprep.subr.mxu0 0.0
    %657 = vmatpush2.msra.mxu0 0.0
    %658 = vmatprep.subr.mxu0 0.0
    %659 = vmatpush2.msra.mxu0 0.0
    %660 = vmatprep.subr.mxu0 0.0
    %661 = vmatpush2.msra.mxu0 0.0
    %662 = vmatprep.subr.mxu0 0.0
    %663 = vmatpush2.msra.mxu0 0.0
    %664 = vmatprep.subr.mxu0 0.0
    %665 = vmatpush2.msra.mxu0 0.0
    %666 = vmatprep.subr.mxu0 0.0
    %667 = vmatpush2.msra.mxu0 0.0
    %668 = vmatprep.subr.mxu0 0.0
    %669 = vmatpush2.msra.mxu0 0.0
    %670 = vmatprep.subr.mxu0 0.0
    %671 = vmatpush2.msra.mxu0 0.0
    %672 = vmatprep.subr.mxu0 0.0
    %673 = vmatpush2.msra.mxu0 0.0
    %674 = vmatprep.mubr.f32.mxu0 0.0
    %675 = vmatmul.mubr.f32.gmra.mxu0 %v608
    %v676 = vpop.f32.mrf.mxu0
    %v677 = vadd.f32 0.0, %v676
    %v678 = vpop.f32.mrf.mxu0
    %679 = vdwg.mxu0
    %v681 = vsel %vm584, %v606, 0
    %683 = vmatprep.subr.mxu0 0.0
    %684 = vmatpush1.msra.mxu0 0.0
    %685 = vmatprep.subr.mxu0 0.0
    %686 = vmatpush1.msra.mxu0 0.0
    %687 = vmatprep.subr.mxu0 0.0
    %688 = vmatpush1.msra.mxu0 0.0
    %689 = vmatprep.subr.mxu0 0.0
    %690 = vmatpush1.msra.mxu0 0.0
    %691 = vmatprep.subr.mxu0 0.0
    %692 = vmatpush1.msra.mxu0 0.0
    %693 = vmatprep.subr.mxu0 0.0
    %694 = vmatpush1.msra.mxu0 0.0
    %695 = vmatprep.subr.mxu0 0.0
    %696 = vmatpush1.msra.mxu0 0.0
    %697 = vmatprep.subr.mxu0 0.0
    %698 = vmatpush1.msra.mxu0 0.0
    %699 = vmatprep.subr.mxu0 0.0
    %700 = vmatpush1.msra.mxu0 0.0
    %701 = vmatprep.subr.mxu0 0.0
    %702 = vmatpush1.msra.mxu0 0.0
    %703 = vmatprep.subr.mxu0 0.0
    %704 = vmatpush1.msra.mxu0 0.0
    %705 = vmatprep.subr.mxu0 0.0
    %706 = vmatpush1.msra.mxu0 0.0
    %707 = vmatprep.subr.mxu0 0.0
    %708 = vmatpush1.msra.mxu0 0.0
    %709 = vmatprep.subr.mxu0 0.0
    %710 = vmatpush1.msra.mxu0 0.0
    %711 = vmatprep.subr.mxu0 0.0
    %712 = vmatpush1.msra.mxu0 0.0
    %713 = vmatprep.subr.mxu0 0.0
    %714 = vmatpush1.msra.mxu0 %v392
    %715 = vmatprep.subr.mxu0 0.0
    %716 = vmatpush2.msra.mxu0 0.0
    %717 = vmatprep.subr.mxu0 0.0
    %718 = vmatpush2.msra.mxu0 0.0
    %719 = vmatprep.subr.mxu0 0.0
    %720 = vmatpush2.msra.mxu0 0.0
    %721 = vmatprep.subr.mxu0 0.0
    %722 = vmatpush2.msra.mxu0 0.0
    %723 = vmatprep.subr.mxu0 0.0
    %724 = vmatpush2.msra.mxu0 0.0
    %725 = vmatprep.subr.mxu0 0.0
    %726 = vmatpush2.msra.mxu0 0.0
    %727 = vmatprep.subr.mxu0 0.0
    %728 = vmatpush2.msra.mxu0 0.0
    %729 = vmatprep.subr.mxu0 0.0
    %730 = vmatpush2.msra.mxu0 0.0
    %731 = vmatprep.subr.mxu0 0.0
    %732 = vmatpush2.msra.mxu0 0.0
    %733 = vmatprep.subr.mxu0 0.0
    %734 = vmatpush2.msra.mxu0 0.0
    %735 = vmatprep.subr.mxu0 0.0
    %736 = vmatpush2.msra.mxu0 0.0
    %737 = vmatprep.subr.mxu0 0.0
    %738 = vmatpush2.msra.mxu0 0.0
    %739 = vmatprep.subr.mxu0 0.0
    %740 = vmatpush2.msra.mxu0 0.0
    %741 = vmatprep.subr.mxu0 0.0
    %742 = vmatpush2.msra.mxu0 0.0
    %743 = vmatprep.subr.mxu0 0.0
    %744 = vmatpush2.msra.mxu0 0.0
    %745 = vmatprep.subr.mxu0 0.0
    %746 = vmatpush2.msra.mxu0 0.0
    %747 = vmatprep.mubr.f32.mxu0 0.0
    %748 = vmatmul.mubr.f32.gmra.mxu0 %v681
    %v749 = vpop.f32.mrf.mxu0
    %v750 = vadd.f32 0.0, %v749
    %v751 = vpop.f32.mrf.mxu0
    %752 = vdwg.mxu0
    %753 = vst.msk [vmem:[#allocation13] sm:$0xff] %vm395, %v677
    %754 = vst.msk [vmem:[#allocation13 + $0x8] sm:$0xff] %vm395, %v750
    // Predicated region
    $region66: #{tpu_custom_call.1} parent=1 // pred_check
      _
    $region67: #{tpu_custom_call.1} parent=1 // pred_check_branch
      %756 = sbr.rel (0) target = $region69
    $region68: #{tpu_custom_call.1} parent=1 // pred_region
      %s758 = ssub.s32 256, 256
      %759 = vsyncadd [#allocation4], %s758
      %s760 = sshll.u32 [#allocation13], 4
      %s761 = int_to_ptr.vmem [resolvable:$true] %s760
      %766 = dma.vmem_to_hbm [thread:$0]  %s761, 256, %s10, [#allocation4], 128, 128, 8
    $region69: #{tpu_custom_call.1} parent=1 // pred_fallthru
      _
    // Predicated region
    $region70: #{tpu_custom_call.1} parent=1 // pred_check
      _
    $region71: #{tpu_custom_call.1} parent=1 // pred_check_branch
      %768 = sbr.rel (0) target = $region73
    $region72: #{tpu_custom_call.1} parent=1 // pred_region
      %769 = dma.done [#allocation4], 256
    $region73: #{tpu_custom_call.1} parent=1 // pred_fallthru
      _
    %770 = vsyncpa [#allocation3], 1
    %771 = vsyncpa [#allocation6], 1
    %772 = vsyncpa [#allocation9], 1
    %773 = vsyncpa [#allocation12], 1
    %774 = vsyncpa [#allocation4], 1

</llo_original>
